<compile_context>
chip_gen: v6e
topology: v6e:2x2x1
jax: 0.10.0
libtpu: 0.0.40
codegen_flags: <defaults>
</compile_context>

<pallas_src>
import numpy as np
import jax
import jax.numpy as jnp
from jax.experimental import pallas as pl
from jax.experimental.pallas import tpu as pltpu


# ---------------------------------------------------------------------------
# Kernels
# ---------------------------------------------------------------------------

def _rank1_fma_kernel(x_ref, col_ref, row_ref, o_ref):
    # x_ref/o_ref: (C, T); col_ref: (C, 1); row_ref: (1, T)
    o_ref[...] = (x_ref[...] + col_ref[...] * row_ref[...]).astype(o_ref.dtype)


def _add_kernel(x_ref, a_ref, o_ref):
    # x_ref/a_ref/o_ref: (R, cols) — plain tiled elementwise add.
    o_ref[...] = (x_ref[...] + a_ref[...]).astype(o_ref.dtype)


# ---------------------------------------------------------------------------
# Tiling helpers
# ---------------------------------------------------------------------------

def _chip_budgets():
    """Returns (per-block byte budget for the big x slab, scoped VMEM limit)."""
    budget = 4 * 1024 * 1024           # safe default / v7x (64 MiB per-TC VMEM)
    vmem_limit = 48 * 1024 * 1024      # < 64 MiB, valid on every generation
    try:
        info = pltpu.get_tpu_info()
        if info.vmem_capacity_bytes >= 96 * 1024 * 1024:   # v5e / v6e: 128 MiB
            budget = 8 * 1024 * 1024
            vmem_limit = 64 * 1024 * 1024
    except Exception:
        pass                           # unknown chip -> keep conservative values
    return budget, vmem_limit


def _largest_aligned_divisor(extent, align, cap):
    """Largest divisor of `extent` that is a multiple of `align` and <= cap.
    Returns None if `extent` is not a multiple of `align`."""
    if extent % align != 0:
        return None
    cap = max(cap, align)
    n = extent // align
    best = align
    for d in range(1, n + 1):
        if n % d == 0 and d * align <= cap:
            best = d * align
    return best


# ---------------------------------------------------------------------------
# Forward
# ---------------------------------------------------------------------------

def noise_applying_forward(x, weight, noise=None, *, noise_type='spatial',
                           randomize_noise=False, key=None):
    """Pallas implementation of NoiseApplyingLayer.forward.

    x:      (B, C, H, W)
    weight: (C,)   for 'spatial';  (H, W) for 'channel'
    noise:  (1 or B, 1, H, W) for 'spatial';  (1 or B, C, 1, 1) for 'channel'
    """
    noise_type = noise_type.lower()
    if x.ndim != 4:
        raise ValueError(
            f'The input tensor should be with shape [batch_size, channel, '
            f'height, width], but `{x.shape}` is received!')
    x = jnp.asarray(x)
    b, c, h, w = x.shape
    hw = h * w
    dtype = x.dtype
    itemsize = jnp.dtype(dtype).itemsize

    if randomize_noise:
        if key is None:
            raise ValueError('randomize_noise=True requires a PRNG key.')
        # TODO(synk): RNG stream differs from torch.randn; values are i.i.d. N(0,1).
        if noise_type == 'spatial':
            noise = jax.random.normal(key, (b, 1, h, w), dtype=dtype)
        elif noise_type == 'channel':
            noise = jax.random.normal(key, (b, c, 1, 1), dtype=dtype)
    if noise is None:
        raise ValueError('noise must be provided when randomize_noise=False.')
    noise = jnp.asarray(noise, dtype=dtype)
    weight = jnp.asarray(weight, dtype=dtype)

    if noise_type == 'spatial':
        col = weight.reshape(1, c, 1)                         # per-channel
        row = noise.reshape(noise.shape[0], 1, hw)            # per-pixel
    elif noise_type == 'channel':
        col = noise.reshape(noise.shape[0], c, 1)             # per-channel
        row = weight.reshape(1, 1, hw)                        # per-pixel
    else:
        raise NotImplementedError(f'Not implemented noise type: `{noise_type}`!')

    budget, vmem_limit = _chip_budgets()
    compiler_params = pltpu.CompilerParams(
        dimension_semantics=("parallel", "parallel"),
        vmem_limit_bytes=vmem_limit)
    sublane_pack = 32 // itemsize          # 8 for f32, 16 for bf16, 32 for int8
    min_steps = 2 if b == 1 else 1         # keep both v7x TCs busy when B == 1

    # NOTE: out is a pure elementwise update of x; `input_output_aliases={0:0}`
    # (with donated x) would halve peak HBM footprint in larger graphs.

    if hw % 128 == 0 and c >= sublane_pack:
        # ---- Path A: rank-1 fma over lane-dense (C, tile) slabs -------------
        cap = budget // max(1, c * itemsize)
        if min_steps > 1:
            cap = min(cap, hw // min_steps)
        tile = _largest_aligned_divisor(hw, 128, cap)
        n_hw = hw // tile

        col_b = (col.shape[0] == b and b > 1)
        row_b = (row.shape[0] == b and b > 1)
        col_im = (lambda bi, ti: (bi, 0, 0)) if col_b else (lambda bi, ti: (0, 0, 0))
        row_im = (lambda bi, ti: (bi, 0, ti)) if row_b else (lambda bi, ti: (0, 0, ti))

        out = pl.pallas_call(
            _rank1_fma_kernel,
            out_shape=jax.ShapeDtypeStruct((b, c, hw), dtype),
            grid_spec=pltpu.PrefetchScalarGridSpec(
                num_scalar_prefetch=0,
                grid=(b, n_hw),
                in_specs=[
                    pl.BlockSpec((None, c, tile), lambda bi, ti: (bi, 0, ti)),
                    pl.BlockSpec((None, c, 1), col_im),
                    pl.BlockSpec((None, 1, tile), row_im),
                ],
                out_specs=pl.BlockSpec((None, c, tile), lambda bi, ti: (bi, 0, ti)),
            ),
            compiler_params=compiler_params,
        )(x.reshape(b, c, hw), col, row)
        return out.reshape(b, c, h, w)

    # ---- Path B: fold C into the lane axis; add a precomputed rank-1 term ---
    # `add` is tiny whenever this path triggers with the buffer noise (Bn == 1).
    # TODO(synk): with randomize_noise + small C, `add` is batch-sized; in-kernel
    # RNG (pltpu.prng_seed + pltpu.stateful_normal) would avoid materializing it.
    add = col * row                          # (Bn, C, HW)
    bn = add.shape[0]
    flat = c * hw
    cols = 128 if flat % 128 == 0 else flat  # lane-dense whenever possible
    rows = flat // cols

    cap = budget // max(1, cols * itemsize)
    if min_steps > 1:
        cap = min(cap, rows // min_steps)
    tile_r = _largest_aligned_divisor(rows, 8, cap)
    if tile_r is None:                       # rows not a multiple of 8 -> full
        tile_r = rows
    n_r = rows // tile_r

    a_im = (lambda bi, ri: (bi, ri, 0)) if (bn == b) else (lambda bi, ri: (0, ri, 0))

    out = pl.pallas_call(
        _add_kernel,
        out_shape=jax.ShapeDtypeStruct((b, rows, cols), dtype),
        grid_spec=pltpu.PrefetchScalarGridSpec(
            num_scalar_prefetch=0,
            grid=(b, n_r),
            in_specs=[
                pl.BlockSpec((None, tile_r, cols), lambda bi, ri: (bi, ri, 0)),
                pl.BlockSpec((None, tile_r, cols), a_im),
            ],
            out_specs=pl.BlockSpec((None, tile_r, cols), lambda bi, ri: (bi, ri, 0)),
        ),
        compiler_params=compiler_params,
    )(x.reshape(b, rows, cols), add.reshape(bn, rows, cols))
    return out.reshape(b, c, h, w)


def make_noise_layer_params(key, resolution, channels, noise_type='spatial',
                            dtype=jnp.float32):
    """Mirrors NoiseApplyingLayer.__init__: noise buffer ~ N(0,1), weight = 0."""
    noise_type = noise_type.lower()
    if noise_type == 'spatial':
        noise = jax.random.normal(key, (1, 1, resolution, resolution), dtype=dtype)
        weight = jnp.zeros((channels,), dtype=dtype)
    elif noise_type == 'channel':
        noise = jax.random.normal(key, (1, channels, 1, 1), dtype=dtype)
        weight = jnp.zeros((resolution, resolution), dtype=dtype)
    else:
        raise NotImplementedError(f'Not implemented noise type: `{noise_type}`!')
    return weight, noise


def _reference_forward(x, weight, noise, noise_type='spatial'):
    b, c, h, w = x.shape
    if noise_type == 'spatial':
        return x + noise * weight.reshape(1, c, 1, 1)
    return x + noise * weight.reshape(1, 1, h, w)


if __name__ == "__main__":
    key = jax.random.PRNGKey(0)
    kx, kw_sp, kn_sp, kw_ch, kn_ch, kr, kx2, kw2, kn2, kx3 = jax.random.split(key, 10)

    # ---------------- small-C case (Path B: folded lane-dense) --------------
    B, C, RES = 2, 4, 16
    x = jax.random.normal(kx, (B, C, RES, RES), dtype=jnp.float32)

    w_sp = jax.random.normal(kw_sp, (C,), dtype=jnp.float32)
    n_sp = jax.random.normal(kn_sp, (1, 1, RES, RES), dtype=jnp.float32)
    out_sp = jax.block_until_ready(
        noise_applying_forward(x, w_sp, n_sp, noise_type='spatial'))
    np.testing.assert_allclose(np.asarray(out_sp),
                               np.asarray(_reference_forward(x, w_sp, n_sp, 'spatial')),
                               rtol=1e-6, atol=1e-6)

    w_ch = jax.random.normal(kw_ch, (RES, RES), dtype=jnp.float32)
    n_ch = jax.random.normal(kn_ch, (1, C, 1, 1), dtype=jnp.float32)
    out_ch = jax.block_until_ready(
        noise_applying_forward(x, w_ch, n_ch, noise_type='channel'))
    np.testing.assert_allclose(np.asarray(out_ch),
                               np.asarray(_reference_forward(x, w_ch, n_ch, 'channel')),
                               rtol=1e-6, atol=1e-6)

    # randomize_noise=True (per-batch noise)
    out_rand = jax.block_until_ready(
        noise_applying_forward(x, w_sp, None, noise_type='spatial',
                               randomize_noise=True, key=kr))
    n_rand = jax.random.normal(kr, (B, 1, RES, RES), dtype=x.dtype)
    np.testing.assert_allclose(np.asarray(out_rand),
                               np.asarray(_reference_forward(x, w_sp, n_rand, 'spatial')),
                               rtol=1e-6, atol=1e-6)

    # default init (zero weight) => identity, matching nn.Module init
    w0, n0 = make_noise_layer_params(kn_sp, RES, C, 'spatial')
    out0 = jax.block_until_ready(
        noise_applying_forward(x, w0, n0, noise_type='spatial'))
    np.testing.assert_allclose(np.asarray(out0), np.asarray(x), rtol=1e-6, atol=1e-6)

    # ---------------- regular-C case (Path A: in-kernel rank-1 fma) ---------
    B2, C2, RES2 = 2, 16, 16
    x2 = jax.random.normal(kx2, (B2, C2, RES2, RES2), dtype=jnp.float32)
    w2_sp = jax.random.normal(kw2, (C2,), dtype=jnp.float32)
    n2_sp = jax.random.normal(kn2, (1, 1, RES2, RES2), dtype=jnp.float32)
    out2 = jax.block_until_ready(
        noise_applying_forward(x2, w2_sp, n2_sp, noise_type='spatial'))
    np.testing.assert_allclose(np.asarray(out2),
                               np.asarray(_reference_forward(x2, w2_sp, n2_sp, 'spatial')),
                               rtol=1e-6, atol=1e-6)

    w2_ch = jax.random.normal(kw2, (RES2, RES2), dtype=jnp.float32)
    n2_ch = jax.random.normal(kn2, (1, C2, 1, 1), dtype=jnp.float32)
    out2c = jax.block_until_ready(
        noise_applying_forward(x2, w2_ch, n2_ch, noise_type='channel'))
    np.testing.assert_allclose(np.asarray(out2c),
                               np.asarray(_reference_forward(x2, w2_ch, n2_ch, 'channel')),
                               rtol=1e-6, atol=1e-6)

    # ---------------- B == 1 case (forced >= 2 grid steps for megacore) -----
    B3, C3, RES3 = 1, 16, 32
    x3 = jax.random.normal(kx3, (B3, C3, RES3, RES3), dtype=jnp.float32)
    n3_sp = jax.random.normal(kn2, (1, 1, RES3, RES3), dtype=jnp.float32)
    out3 = jax.block_until_ready(
        noise_applying_forward(x3, w2_sp, n3_sp, noise_type='spatial'))
    np.testing.assert_allclose(np.asarray(out3),
                               np.asarray(_reference_forward(x3, w2_sp, n3_sp, 'spatial')),
                               rtol=1e-6, atol=1e-6)

    print("KERNEL_OK")
</pallas_src>

<mosaic_0001>
module attributes {stable_mosaic.version = 11 : i64} {
  func.func @_add_kernel(%arg0: i32, %arg1: i32, %arg2: memref<1x8x128xf32, #tpu.memory_space<vmem>>, %arg3: memref<1x8x128xf32, #tpu.memory_space<vmem>>, %arg4: memref<1x8x128xf32, #tpu.memory_space<vmem>>) attributes {dimension_semantics = [#tpu.dimension_semantics<parallel>, #tpu.dimension_semantics<parallel>], iteration_bounds = array<i64: 2, 1>, scalar_prefetch = 0 : i64, scratch_operands = 0 : i64, tpu.core_type = #tpu.core_type<tc>, window_params = [{transform_indices = @transform_0, window_bounds = array<i64: 1, 8, 128>}, {transform_indices = @transform_1, window_bounds = array<i64: 1, 8, 128>}, {transform_indices = @transform_2, window_bounds = array<i64: 1, 8, 128>}]} {
    %c0 = arith.constant 0 : index
    %c0_0 = arith.constant 0 : index
    %c0_1 = arith.constant 0 : index
    %0 = vector.load %arg2[%c0, %c0_0, %c0_1] : memref<1x8x128xf32, #tpu.memory_space<vmem>>, vector<1x8x128xf32>
    %1 = vector.shape_cast %0 : vector<1x8x128xf32> to vector<8x128xf32>
    %c0_2 = arith.constant 0 : index
    %c0_3 = arith.constant 0 : index
    %c0_4 = arith.constant 0 : index
    %2 = vector.load %arg3[%c0_2, %c0_3, %c0_4] : memref<1x8x128xf32, #tpu.memory_space<vmem>>, vector<1x8x128xf32>
    %3 = vector.shape_cast %2 : vector<1x8x128xf32> to vector<8x128xf32>
    %4 = arith.addf %1, %3 : vector<8x128xf32>
    %c0_5 = arith.constant 0 : index
    %c0_6 = arith.constant 0 : index
    %c0_7 = arith.constant 0 : index
    %5 = vector.load %arg4[%c0_5, %c0_6, %c0_7] : memref<1x8x128xf32, #tpu.memory_space<vmem>>, vector<1x8x128xf32>
    %6 = vector.shape_cast %5 : vector<1x8x128xf32> to vector<8x128xf32>
    %7 = vector.shape_cast %4 : vector<8x128xf32> to vector<1x8x128xf32>
    tpu.vector_store %arg4[%c0_5, %c0_6, %c0_7], %7 {strides = array<i32>} : memref<1x8x128xf32, #tpu.memory_space<vmem>>, vector<1x8x128xf32>,
    return
  }
  func.func @transform_0(%arg0: i32, %arg1: i32) -> (i32, i32, i32) {
    %c0_i32 = arith.constant 0 : i32
    %c0_i32_0 = arith.constant 0 : i32
    return %arg0, %arg1, %c0_i32 : i32, i32, i32
  }
  func.func @transform_1(%arg0: i32, %arg1: i32) -> (i32, i32, i32) {
    %c0_i32 = arith.constant 0 : i32
    %c0_i32_0 = arith.constant 0 : i32
    %c0_i32_1 = arith.constant 0 : i32
    return %c0_i32, %arg1, %c0_i32_0 : i32, i32, i32
  }
  func.func @transform_2(%arg0: i32, %arg1: i32) -> (i32, i32, i32) {
    %c0_i32 = arith.constant 0 : i32
    %c0_i32_0 = arith.constant 0 : i32
    return %arg0, %arg1, %c0_i32 : i32, i32, i32
  }
}

</mosaic_0001>

<llo_original>
// kernel: tpu_custom_call.1
$region0: #{tpu_custom_call.1}
  #allocation0 [shape = 'u32[]', space=smem, size = 0x4, offset = 0x4, fixed_abs, tag = 'smem constant byte address 0x4 - core index']
  #allocation1 [shape = 'u32[144,128]{1,0:T(1,128)}', space=vmem, size = 0x12000, scoped, tag = 'internal scratch']
  %s0 = inlined_call_operand.hbm [shape: f32[2,8,128], index: 0, kind: input, shape index: {}]
  %s1 = inlined_call_operand.hbm [shape: f32[1,8,128], index: 1, kind: input, shape index: {}]
  %s2 = inlined_call_operand.hbm [shape: f32[2,8,128], index: 2, kind: output, shape index: {}]
  %s3 = sld [smem:[#allocation0]]
  $region49: #{tpu_custom_call.1} parent=0
    _
  %s5 = ssub.s32 1, %s3
  %s6 = scalar_select 0, %s5, %s3
  $region1: #{tpu_custom_call.1} parent=0
    #allocation2 [shape = 'u8[8192]{0}', space=vmem, size = 0x2000, scoped, tag = 'input window, operand 0']
    #allocation3 [shape = 's32[2]{0}', space=sflag, size = 0x8, scoped, tag = 'scoped memory for tpu_custom_call.1']
    #allocation4 [shape = 's32[2]{0}', space=sflag, size = 0x8, scoped, tag = 'scoped memory for tpu_custom_call.1']
    #allocation5 [shape = 'u8[4096]{0}', space=vmem, size = 0x1000, scoped, tag = 'input window, operand 1, single buffered']
    #allocation6 [shape = 's32[1]{0}', space=sflag, size = 0x4, scoped, tag = 'scoped memory for tpu_custom_call.1']
    #allocation7 [shape = 'u8[8192]{0}', space=vmem, size = 0x2000, scoped, tag = 'output window, operand 0']
    %7 = vsyncpa [#allocation3], 0
    %s8 = scalar_lea.sflag [#allocation3], 1
    %9 = vsyncpa %s8, 0
    %10 = vsyncpa [#allocation6], 0
    %11 = vsyncpa [#allocation4], 0
    %s12 = scalar_lea.sflag [#allocation4], 1
    %13 = vsyncpa %s12, 0
    loop: start=0, step=1, limit=4
    $region2: #{tpu_custom_call.1} parent=1 // loop_pre_header
      _
    $region3: #{tpu_custom_call.1} parent=1 // loop_header
      %s15 = sphi 0, %s19
      %p16 = scmp.ge.s32.totalorder %s15, 4
      %s22 = sphi 0, %s34
      %s23 = sphi 0, %s30
      %s24 = sphi 0, %s22
      %s25 = sphi 0, %s23
      %s26 = sphi 0, %s24
      %s27 = sphi 0, %s25
      %s39 = sphi 0, %s41
      %s42 = sphi 0, %s39
      %s43 = sphi 0, %s42
      %s59 = sphi 0, %s43
      %s65 = sphi 0, %s67
      %s68 = sphi 0, %s65
      %s69 = sphi 0, %s68
      %s85 = sphi 0, %s69
      %s93 = sphi 0, %s95
      %s96 = sphi 0, %s93
      %s97 = sphi 0, %s96
      %s113 = sphi 0, %s97
    $region4: #{tpu_custom_call.1} parent=1 // loop_header_branch
      %18 = sbr.rel (%p16) target = $region8
    $region5: #{tpu_custom_call.1} parent=1 // loop_body
      %s20 = ssub.s32 %s15, 1
      %s21 = ssub.s32 %s15, 2
      %s28 = sadd.s32 1, %s23
      %p29 = scmp.ge.s32.totalorder %s28, 1
      %s30 = scalar_select %p29, 0, %s28
      %s31 = sadd.s32 1, %s22
      %s32 = scalar_select %p29, %s31, %s22
      %p33 = scmp.ge.s32.totalorder %s32, 2
      %s34 = scalar_select %p33, 0, %s32
      %s35 = ssub.s32 %s22, %s34
      %s36 = ssub.s32 %s23, %s30
      %s37 = sor.u32 %s35, %s36
      %p38 = scmp.eq.s32.totalorder %s37, 0
      %s40 = sadd.s32 %s39, 1
      %s41 = scalar_select %p38, %s39, %s40
      %p44 = pneg %p38
      %p45 = scmp.eq.s32.totalorder %s15, 1
      %p46 = por %p44, %p45
      %p47 = scmp.ne.s32.totalorder %s39, %s42
      %p48 = scmp.eq.s32.totalorder %s15, 0
      %p49 = por %p47, %p48
      %p50 = scmp.ne.s32.totalorder %s39, %s42
      %p51 = scmp.eq.s32.totalorder %s20, 1
      %p52 = por %p50, %p51
      %p53 = scmp.ne.s32.totalorder %s42, %s43
      %p54 = scmp.eq.s32.totalorder %s20, 0
      %p55 = por %p53, %p54
      %p56 = scmp.ne.s32.totalorder %s42, %s43
      %p57 = scmp.eq.s32.totalorder %s21, 1
      %p58 = por %p56, %p57
      %p60 = scmp.ne.s32.totalorder %s43, %s59
      %p61 = scmp.eq.s32.totalorder %s21, 0
      %p62 = por %p60, %p61
      %s63 = ssub.s32 %s23, %s30
      %p64 = scmp.eq.s32.totalorder %s63, 0
      %s66 = sadd.s32 %s65, 1
      %s67 = scalar_select %p64, %s65, %s66
      %p70 = pneg %p64
      %p71 = scmp.eq.s32.totalorder %s15, 1
      %p72 = por %p70, %p71
      %p73 = scmp.ne.s32.totalorder %s65, %s68
      %p74 = scmp.eq.s32.totalorder %s15, 0
      %p75 = por %p73, %p74
      %p76 = scmp.ne.s32.totalorder %s65, %s68
      %p77 = scmp.eq.s32.totalorder %s20, 1
      %p78 = por %p76, %p77
      %p79 = scmp.ne.s32.totalorder %s68, %s69
      %p80 = scmp.eq.s32.totalorder %s20, 0
      %p81 = por %p79, %p80
      %p82 = scmp.ne.s32.totalorder %s68, %s69
      %p83 = scmp.eq.s32.totalorder %s21, 1
      %p84 = por %p82, %p83
      %p86 = scmp.ne.s32.totalorder %s69, %s85
      %p87 = scmp.eq.s32.totalorder %s21, 0
      %p88 = por %p86, %p87
      %s89 = ssub.s32 %s22, %s34
      %s90 = ssub.s32 %s23, %s30
      %s91 = sor.u32 %s89, %s90
      %p92 = scmp.eq.s32.totalorder %s91, 0
      %s94 = sadd.s32 %s93, 1
      %s95 = scalar_select %p92, %s93, %s94
      %p98 = pneg %p92
      %p99 = scmp.eq.s32.totalorder %s15, 1
      %p100 = por %p98, %p99
      %p101 = scmp.ne.s32.totalorder %s93, %s96
      %p102 = scmp.eq.s32.totalorder %s15, 0
      %p103 = por %p101, %p102
      %p104 = scmp.ne.s32.totalorder %s93, %s96
      %p105 = scmp.eq.s32.totalorder %s20, 1
      %p106 = por %p104, %p105
      %p107 = scmp.ne.s32.totalorder %s96, %s97
      %p108 = scmp.eq.s32.totalorder %s20, 0
      %p109 = por %p107, %p108
      %p110 = scmp.ne.s32.totalorder %s96, %s97
      %p111 = scmp.eq.s32.totalorder %s21, 1
      %p112 = por %p110, %p111
      %p114 = scmp.ne.s32.totalorder %s97, %s113
      %p115 = scmp.eq.s32.totalorder %s21, 0
      %p116 = por %p114, %p115
      %p117 = scmp.le.s32.totalorder 1, %s15
      %p118 = scmp.lt.s32.totalorder %s15, 3
      %p119 = pnand %p117, %p118
      %p120 = pneg %p119
      // Predicated region
      $region9: #{tpu_custom_call.1} parent=5 // pred_check
        _
      $region10: #{tpu_custom_call.1} parent=5 // pred_check_branch
        %122 = sbr.rel (%p119) target = $region12
      $region11: #{tpu_custom_call.1} parent=5 // pred_region
        %s123 = ssub.s32 %s15, 1
        // Predicated region
        $region13: #{tpu_custom_call.1} parent=11 // pred_check
          %p124 = pneg %p81
        $region14: #{tpu_custom_call.1} parent=11 // pred_check_branch
          %126 = sbr.rel (%p124) target = $region16
        $region15: #{tpu_custom_call.1} parent=11 // pred_region
          %s128 = ssub.s32 128, 128
          %129 = vsyncadd [#allocation6], %s128
          %s130 = smul.addr %s25, 128
          %s131 = scalar_lea.hbm %s1, %s130
          %s133 = sshll.u32 [#allocation5], 4
          %s134 = int_to_ptr.vmem [resolvable:$true] %s133
          %136 = dma.hbm_to_vmem [thread:$0]  %s131, 128, %s134, [#allocation6]
        $region16: #{tpu_custom_call.1} parent=11 // pred_fallthru
          _
      $region12: #{tpu_custom_call.1} parent=5 // pred_fallthru
        _
      %p137 = scmp.lt.s32.totalorder %s15, 2
      // Predicated region
      $region17: #{tpu_custom_call.1} parent=5 // pred_check
        %p138 = pneg %p137
      $region18: #{tpu_custom_call.1} parent=5 // pred_check_branch
        %140 = sbr.rel (%p138) target = $region20
      $region19: #{tpu_custom_call.1} parent=5 // pred_region
        // Predicated region
        $region21: #{tpu_custom_call.1} parent=19 // pred_check
          %p141 = pneg %p49
        $region22: #{tpu_custom_call.1} parent=19 // pred_check_branch
          %143 = sbr.rel (%p141) target = $region24
        $region23: #{tpu_custom_call.1} parent=19 // pred_region
          %s144 = sand.u32 %s39, 1
          %s145 = scalar_lea.sflag [#allocation3], %s144
          %s146 = sand.u32 %s39, 1
          %s147 = smul.addr %s146, 8
          %s148 = scalar_lea.vmem [#allocation2], %s147
          %s150 = ssub.s32 128, 128
          %151 = vsyncadd %s145, %s150
          %s152 = sadd.s32 %s23, %s22
          %s153 = smul.addr %s152, 128
          %s154 = scalar_lea.hbm %s0, %s153
          %s156 = sshll.u32 %s148, 4
          %s157 = int_to_ptr.vmem [resolvable:$true] %s156
          %159 = dma.hbm_to_vmem [thread:$0]  %s154, 128, %s157, %s145
        $region24: #{tpu_custom_call.1} parent=19 // pred_fallthru
          _
      $region20: #{tpu_custom_call.1} parent=5 // pred_fallthru
        _
      %p160 = scmp.le.s32.totalorder 1, %s15
      %p161 = scmp.lt.s32.totalorder %s15, 3
      %p162 = pnand %p160, %p161
      %p163 = pneg %p162
      // Predicated region
      $region25: #{tpu_custom_call.1} parent=5 // pred_check
        _
      $region26: #{tpu_custom_call.1} parent=5 // pred_check_branch
        %165 = sbr.rel (%p162) target = $region28
      $region27: #{tpu_custom_call.1} parent=5 // pred_region
        %s166 = ssub.s32 %s15, 1
        %s167 = sand.u32 %s42, 1
        %s168 = scalar_lea.sflag [#allocation3], %s167
        %s169 = sand.u32 %s42, 1
        %s170 = smul.addr %s169, 8
        %s171 = scalar_lea.vmem [#allocation2], %s170
        // Predicated region
        $region29: #{tpu_custom_call.1} parent=27 // pred_check
          %p172 = pneg %p55
        $region30: #{tpu_custom_call.1} parent=27 // pred_check_branch
          %174 = sbr.rel (%p172) target = $region32
        $region31: #{tpu_custom_call.1} parent=27 // pred_region
          %175 = dma.done %s168, 128
        $region32: #{tpu_custom_call.1} parent=27 // pred_fallthru
          _
        // Predicated region
        $region33: #{tpu_custom_call.1} parent=27 // pred_check
          %p176 = pneg %p81
        $region34: #{tpu_custom_call.1} parent=27 // pred_check_branch
          %178 = sbr.rel (%p176) target = $region36
        $region35: #{tpu_custom_call.1} parent=27 // pred_region
          %179 = dma.done [#allocation6], 128
        $region36: #{tpu_custom_call.1} parent=27 // pred_fallthru
          _
        %s180 = sand.u32 %s42, 1
        %s181 = scalar_lea.sflag [#allocation3], %s180
        %s182 = sand.u32 %s42, 1
        %s183 = smul.addr %s182, 8
        %s184 = scalar_lea.vmem [#allocation2], %s183
        %p185 = pneg %p55
        %p186 = pneg %p52
        %p187 = pneg %p81
        %p188 = pneg %p78
        %p189 = pneg %p109
        %p190 = pneg %p106
        %s191 = sand.u32 %s96, 1
        %s192 = scalar_lea.sflag [#allocation4], %s191
        %s193 = sand.u32 %s96, 1
        %s194 = smul.addr %s193, 8
        %s195 = scalar_lea.vmem [#allocation7], %s194
        %v196 = vld [vmem:[%s171] sm:$0xff]
        %v197 = vld [vmem:[#allocation5] sm:$0xff]
        %v198 = vadd.f32 %v196, %v197
        %199 = vst [vmem:[%s195] sm:$0xff] %v198
        %s200 = sand.u32 %s96, 1
        %s201 = scalar_lea.sflag [#allocation4], %s200
        %s202 = sand.u32 %s96, 1
        %s203 = smul.addr %s202, 8
        %s204 = scalar_lea.vmem [#allocation7], %s203
        // Predicated region
        $region37: #{tpu_custom_call.1} parent=27 // pred_check
          %p205 = pneg %p106
        $region38: #{tpu_custom_call.1} parent=27 // pred_check_branch
          %207 = sbr.rel (%p205) target = $region40
        $region39: #{tpu_custom_call.1} parent=27 // pred_region
          %s209 = ssub.s32 128, 128
          %210 = vsyncadd %s201, %s209
          %s211 = sadd.s32 %s25, %s24
          %s212 = smul.addr %s211, 128
          %s213 = scalar_lea.hbm %s2, %s212
          %s215 = sshll.u32 %s204, 4
          %s216 = int_to_ptr.vmem [resolvable:$true] %s215
          %218 = dma.vmem_to_hbm [thread:$0]  %s216, 128, %s213, %s201
        $region40: #{tpu_custom_call.1} parent=27 // pred_fallthru
          _
      $region28: #{tpu_custom_call.1} parent=5 // pred_fallthru
        _
      %p219 = scmp.le.s32.totalorder 2, %s15
      // Predicated region
      $region41: #{tpu_custom_call.1} parent=5 // pred_check
        %p220 = pneg %p219
      $region42: #{tpu_custom_call.1} parent=5 // pred_check_branch
        %222 = sbr.rel (%p220) target = $region44
      $region43: #{tpu_custom_call.1} parent=5 // pred_region
        %s223 = ssub.s32 %s15, 2
        // Predicated region
        $region45: #{tpu_custom_call.1} parent=43 // pred_check
          %p224 = pneg %p112
        $region46: #{tpu_custom_call.1} parent=43 // pred_check_branch
          %226 = sbr.rel (%p224) target = $region48
        $region47: #{tpu_custom_call.1} parent=43 // pred_region
          %s227 = sand.u32 %s97, 1
          %s228 = scalar_lea.sflag [#allocation4], %s227
          %s229 = sand.u32 %s97, 1
          %s230 = smul.addr %s229, 8
          %s231 = scalar_lea.vmem [#allocation7], %s230
          %232 = dma.done %s228, 128
        $region48: #{tpu_custom_call.1} parent=43 // pred_fallthru
          _
      $region44: #{tpu_custom_call.1} parent=5 // pred_fallthru
        _
    $region6: #{tpu_custom_call.1} parent=1 // loop_footer
      %s19 = sadd.s32 1, %s15
    $region7: #{tpu_custom_call.1} parent=1 // loop_footer_branch
      %14 = sbr.rel target = $region3
    $region8: #{tpu_custom_call.1} parent=1 // loop_exit
      _
    %233 = vsyncpa [#allocation3], 1
    %s234 = scalar_lea.sflag [#allocation3], 1
    %235 = vsyncpa %s234, 1
    %236 = vsyncpa [#allocation6], 1
    %237 = vsyncpa [#allocation4], 1
    %s238 = scalar_lea.sflag [#allocation4], 1
    %239 = vsyncpa %s238, 1

</llo_original>
